<compile_context>
chip_gen: v6e
topology: v6e:2x2x1
jax: 0.10.0
libtpu: 0.0.40
codegen_flags: <defaults>
</compile_context>

<pallas_src>
import functools

import jax
import jax.numpy as jnp
from jax import lax
from jax.experimental import pallas as pl
from jax.experimental.pallas import tpu as pltpu

LN_EPS = 1e-5  # torch.nn.LayerNorm default


# ----------------------------------------------------------------------------- kernel
def _patch_embed_ln_kernel(x_ref, w_ref, b_ref, g_ref, be_ref, o_ref, *, rows_total):
    """Fused (patches @ W + bias) -> LayerNorm(D) for one row tile.

    x_ref : (TR, P)  flattened patches (row tile, P = C*16*16)
    w_ref : (P, D)   patch-conv weight (resident across the grid)
    b_ref, g_ref, be_ref : (1, D)  conv bias / LN gamma / LN beta (resident)
    o_ref : (TR, D)  output tile
    """
    i = pl.program_id(0)
    tr = x_ref.shape[0]

    x = x_ref[...]
    # The last grid step may be a partial block (R not a multiple of TR): its
    # out-of-range rows hold stale/undefined VMEM data.  Their stores are
    # masked by Pallas anyway, but zero them so every computed value is
    # finite and deterministic (rows are independent, so valid rows are
    # unaffected).
    row = lax.broadcasted_iota(jnp.int32, (tr, 1), 0) + i * tr
    x = jnp.where(row < rows_total, x, jnp.zeros_like(x))

    # Patch embedding on the MXU, f32 accumulation.
    y = jnp.dot(x, w_ref[...], preferred_element_type=jnp.float32)
    y = y + b_ref[...].astype(jnp.float32)

    # LayerNorm over D: biased variance, eps=1e-5, f32 math; single fused
    # affine output pass  out = (y - mean) * (rsqrt(var+eps) * gamma) + beta.
    mean = jnp.mean(y, axis=-1, keepdims=True)
    centered = y - mean
    var = jnp.mean(centered * centered, axis=-1, keepdims=True)
    inv = lax.rsqrt(var + LN_EPS)
    g = g_ref[...].astype(jnp.float32)
    be = be_ref[...].astype(jnp.float32)
    o_ref[...] = (centered * (inv * g) + be).astype(o_ref.dtype)


# ----------------------------------------------------------------------------- helpers
def _sublane_pack(dtype):
    # f32 -> 8 rows per vreg sublane group, bf16 -> 16, int8/fp8 -> 32.
    return 8 * max(1, 4 // jnp.dtype(dtype).itemsize)


def _default_vmem_limit_bytes():
    # Generation-aware: ~half of physical VMEM, capped at 64 MiB.
    # v5e/v6e: 128 MiB physical -> 64 MiB;  v7x: 64 MiB physical -> 32 MiB.
    try:
        cap = int(getattr(pltpu.get_tpu_info(), "vmem_capacity_bytes"))
        return int(min(64 << 20, cap // 2))
    except Exception:
        return 32 << 20  # safe on every generation


# ----------------------------------------------------------------------------- wrapper
@functools.partial(jax.jit,
                   static_argnames=("patch_size", "tile_rows", "vmem_limit_bytes"))
def _fused_patch_embed_ln(x, w, b, gamma, beta, *, patch_size, tile_rows,
                          vmem_limit_bytes):
    B, C, H, W = x.shape
    D = w.shape[0]
    ps = patch_size
    assert H % ps == 0 and W % ps == 0, "feature map must be divisible by the patch size"
    assert w.shape == (D, C, ps, ps)
    P = C * ps * ps
    assert D % 128 == 0 and P % 128 == 0, "patch / embed dims must be lane-aligned"

    gh, gw = H // ps, W // ps
    R = B * gh * gw
    itemsize = jnp.dtype(x.dtype).itemsize
    pack = _sublane_pack(x.dtype)

    # --- layout-only prep (im2col for non-overlapping patches): pure
    # reshape/transpose, no pad and no extra activation round-trip -------------
    patches = jnp.transpose(x.reshape(B, C, gh, ps, gw, ps),
                            (0, 2, 4, 1, 3, 5)).reshape(R, P)
    w_t = w.reshape(D, P).T.astype(x.dtype)           # (P, D): matmul in input dtype
    b2 = b.reshape(1, D).astype(jnp.float32)
    g2 = gamma.reshape(1, D).astype(jnp.float32)
    be2 = beta.reshape(1, D).astype(jnp.float32)

    # --- row-tile size from actual per-step VMEM need --------------------------
    # resident: double-buffered weight + params; per-row: double-buffered input
    # + output tiles in the I/O dtype plus ~4 f32 (TR, D) temporaries.
    resident = 2 * P * D * itemsize + 3 * 2 * D * 4
    bytes_per_row = 2 * (P + D) * itemsize + 4 * D * 4
    budget = max(0, (vmem_limit_bytes * 3) // 4 - resident)
    max_rows = max(pack, budget // bytes_per_row)

    if R <= pack:
        tr = R                                    # single full-extent block
    else:
        tr = min(int(tile_rows), int(max_rows), R)
        tr = max(pack, (tr // pack) * pack)       # keep sublane packing
    n_tiles = pl.cdiv(R, tr)                      # last block may be partial

    kernel = functools.partial(_patch_embed_ln_kernel, rows_total=R)
    out = pl.pallas_call(
        kernel,
        out_shape=jax.ShapeDtypeStruct((R, D), x.dtype),
        grid_spec=pltpu.PrefetchScalarGridSpec(
            num_scalar_prefetch=0,
            grid=(n_tiles,),
            in_specs=[
                pl.BlockSpec((tr, P), lambda i: (i, 0)),
                pl.BlockSpec((P, D), lambda i: (0, 0)),   # weight: resident
                pl.BlockSpec((1, D), lambda i: (0, 0)),   # conv bias: resident
                pl.BlockSpec((1, D), lambda i: (0, 0)),   # LN gamma: resident
                pl.BlockSpec((1, D), lambda i: (0, 0)),   # LN beta: resident
            ],
            out_specs=pl.BlockSpec((tr, D), lambda i: (i, 0)),
        ),
        compiler_params=pltpu.CompilerParams(
            dimension_semantics=("parallel",),
            vmem_limit_bytes=int(vmem_limit_bytes),
        ),
    )(patches, w_t, b2, g2, be2)

    return out.reshape(B, gh * gw, D)


def patch_embed_layernorm(x, w, b, gamma, beta, *, patch_size=16, tile_rows=None,
                          vmem_limit_bytes=None):
    """Fused 图像分块 conv(k=16,s=16,bias) + flatten + transpose + 标准化 (LayerNorm).

    x     : (B, C, H, W) feature map (output of the 裁剪缩放 conv stack), H,W % 16 == 0
    w     : (D, C, 16, 16) patch-conv weight;  b / gamma / beta : (D,)
    returns (B, N, D) in x.dtype with N = (H//16)*(W//16).
    """
    if vmem_limit_bytes is None:
        vmem_limit_bytes = _default_vmem_limit_bytes()
    if tile_rows is None:
        # same tile bytes for narrower dtypes -> twice the rows for bf16.
        tile_rows = 2048 if jnp.dtype(x.dtype).itemsize <= 2 else 1024
    return _fused_patch_embed_ln(x, w, b, gamma, beta,
                                 patch_size=int(patch_size),
                                 tile_rows=int(tile_rows),
                                 vmem_limit_bytes=int(vmem_limit_bytes))


# ----------------------------------------------------------------------------- reference
def _reference(x, w, b, gamma, beta, patch_size=16):
    B, C, H, W = x.shape
    D = w.shape[0]
    ps = patch_size
    gh, gw = H // ps, W // ps
    patches = jnp.transpose(x.reshape(B, C, gh, ps, gw, ps),
                            (0, 2, 4, 1, 3, 5)).reshape(B, gh * gw, C * ps * ps)
    wm = w.reshape(D, -1).T.astype(x.dtype)            # same operand prep as the kernel
    y = jnp.dot(patches.astype(jnp.float32), wm.astype(jnp.float32))
    y = y + b.astype(jnp.float32)
    mean = jnp.mean(y, axis=-1, keepdims=True)
    var = jnp.mean((y - mean) ** 2, axis=-1, keepdims=True)
    return (y - mean) / jnp.sqrt(var + LN_EPS) * gamma + beta


# ----------------------------------------------------------------------------- demo
if __name__ == "__main__":
    key = jax.random.PRNGKey(0)
    kx, kw, kb, kg, kbe, kx2 = jax.random.split(key, 6)

    D, ps, C = 256, 16, 1          # module default 嵌入向量维度=256, 图像块大小=16
    P = C * ps * ps

    w = (1.0 / jnp.sqrt(P)) * jax.random.normal(kw, (D, C, ps, ps), dtype=jnp.float32)
    b = 0.1 * jax.random.normal(kb, (D,), dtype=jnp.float32)
    gamma = 1.0 + 0.1 * jax.random.normal(kg, (D,), dtype=jnp.float32)
    beta = 0.1 * jax.random.normal(kbe, (D,), dtype=jnp.float32)

    # Tolerances allow for MXU matmul-pass precision differences vs the XLA
    # reference (both use f32 accumulation).
    # 1) f32, B*N a multiple of the sublane pack (no partial block).
    x = jax.random.normal(kx, (2, C, 64, 64), dtype=jnp.float32)     # 4x4 patches -> N=16
    out = jax.block_until_ready(patch_embed_layernorm(x, w, b, gamma, beta))
    ref = _reference(x, w, b, gamma, beta)
    assert out.shape == (2, 16, D)
    assert jnp.allclose(out, ref, atol=2e-2, rtol=2e-2), "f32 mismatch vs reference"

    # 2) f32, ragged row count: 3x5 patches -> R = 2*15 = 30 exercises the
    #    cdiv grid + partial last block (no host-side pad / un-pad any more).
    x_odd = jax.random.normal(kx2, (2, C, 48, 80), dtype=jnp.float32)
    out_odd = jax.block_until_ready(patch_embed_layernorm(x_odd, w, b, gamma, beta))
    ref_odd = _reference(x_odd, w, b, gamma, beta)
    assert out_odd.shape == (2, 15, D)
    assert jnp.allclose(out_odd, ref_odd, atol=2e-2, rtol=2e-2), "ragged mismatch"
    assert bool(jnp.all(jnp.isfinite(out_odd)))

    # 3) bf16 I/O (halves HBM bytes; f32 accumulation + f32 LN math in-kernel).
    x_bf = x.astype(jnp.bfloat16)
    out_bf = jax.block_until_ready(patch_embed_layernorm(x_bf, w, b, gamma, beta))
    ref_bf = _reference(x_bf, w, b, gamma, beta)
    assert out_bf.dtype == jnp.bfloat16
    assert jnp.allclose(out_bf.astype(jnp.float32), ref_bf, atol=1e-1, rtol=1e-1), \
        "bf16 mismatch vs reference"

    print("KERNEL_OK")
</pallas_src>

<mosaic_0001>
module attributes {stable_mosaic.version = 11 : i64} {
  func.func @_patch_embed_ln_kernel(%arg0: i32, %arg1: memref<32x256xf32, #tpu.memory_space<vmem>>, %arg2: memref<256x256xf32, #tpu.memory_space<vmem>>, %arg3: memref<1x256xf32, #tpu.memory_space<vmem>>, %arg4: memref<1x256xf32, #tpu.memory_space<vmem>>, %arg5: memref<1x256xf32, #tpu.memory_space<vmem>>, %arg6: memref<32x256xf32, #tpu.memory_space<vmem>>) attributes {dimension_semantics = [#tpu.dimension_semantics<parallel>], iteration_bounds = array<i64: 1>, scalar_prefetch = 0 : i64, scratch_operands = 0 : i64, tpu.core_type = #tpu.core_type<tc>, window_params = [{transform_indices = @transform_0, window_bounds = array<i64: 32, 256>}, {pipeline_mode = #tpu.pipeline_mode<synchronous>, transform_indices = @transform_1, window_bounds = array<i64: 256, 256>}, {pipeline_mode = #tpu.pipeline_mode<synchronous>, transform_indices = @transform_2, window_bounds = array<i64: 1, 256>}, {pipeline_mode = #tpu.pipeline_mode<synchronous>, transform_indices = @transform_3, window_bounds = array<i64: 1, 256>}, {pipeline_mode = #tpu.pipeline_mode<synchronous>, transform_indices = @transform_4, window_bounds = array<i64: 1, 256>}, {transform_indices = @transform_5, window_bounds = array<i64: 32, 256>}]} {
    %c0 = arith.constant 0 : index
    %c0_0 = arith.constant 0 : index
    %0 = vector.load %arg1[%c0, %c0_0] : memref<32x256xf32, #tpu.memory_space<vmem>>, vector<32x256xf32>
    %1 = tpu.iota {dimensions = array<i32: 0>} : vector<32x1xi32>
    %c32_i32 = arith.constant 32 : i32
    %2 = arith.muli %arg0, %c32_i32 : i32
    %3 = vector.broadcast %2 : i32 to vector<32x1xi32>
    %4 = arith.addi %1, %3 : vector<32x1xi32>
    %c32_i32_1 = arith.constant 32 : i32
    %5 = vector.broadcast %c32_i32_1 : i32 to vector<32x1xi32>
    %6 = arith.cmpi slt, %4, %5 : vector<32x1xi32>
    %cst = arith.constant 0.000000e+00 : f32
    %7 = vector.broadcast %cst : f32 to vector<32x256xf32>
    %8 = vector.shape_cast %6 : vector<32x1xi1> to vector<32x1xi1>
    %9 = vector.broadcast %8 : vector<32x1xi1> to vector<32x256xi1>
    %10 = arith.select %9, %0, %7 : vector<32x256xi1>, vector<32x256xf32>
    %c0_2 = arith.constant 0 : index
    %c0_3 = arith.constant 0 : index
    %11 = vector.load %arg2[%c0_2, %c0_3] : memref<256x256xf32, #tpu.memory_space<vmem>>, vector<256x256xf32>
    %cst_4 = arith.constant dense<0.000000e+00> : vector<32x256xf32>
    %12 = tpu.matmul %10, %11, %cst_4 {dimension_numbers = #tpu.dot_dimension_numbers<[1], [0], [0], [1], [0, 0, 1, 1], [], []>} : vector<32x256xf32>, vector<256x256xf32>, vector<32x256xf32> -> vector<32x256xf32>
    %c0_5 = arith.constant 0 : index
    %c0_6 = arith.constant 0 : index
    %13 = vector.load %arg3[%c0_5, %c0_6] : memref<1x256xf32, #tpu.memory_space<vmem>>, vector<1x256xf32>
    %14 = vector.broadcast %13 : vector<1x256xf32> to vector<32x256xf32>
    %15 = arith.addf %12, %14 : vector<32x256xf32>
    %cst_7 = arith.constant dense<0.000000e+00> : vector<32xf32>
    %16 = vector.multi_reduction <add>, %15, %cst_7 [1] : vector<32x256xf32> to vector<32xf32>
    %17 = vector.shape_cast %16 : vector<32xf32> to vector<32x1xf32>
    %cst_8 = arith.constant 2.560000e+02 : f32
    %18 = vector.broadcast %cst_8 : f32 to vector<32x1xf32>
    %19 = arith.divf %17, %18 : vector<32x1xf32>
    %20 = vector.broadcast %19 : vector<32x1xf32> to vector<32x256xf32>
    %21 = arith.subf %15, %20 : vector<32x256xf32>
    %22 = arith.mulf %21, %21 : vector<32x256xf32>
    %cst_9 = arith.constant dense<0.000000e+00> : vector<32xf32>
    %23 = vector.multi_reduction <add>, %22, %cst_9 [1] : vector<32x256xf32> to vector<32xf32>
    %24 = vector.shape_cast %23 : vector<32xf32> to vector<32x1xf32>
    %cst_10 = arith.constant 2.560000e+02 : f32
    %25 = vector.broadcast %cst_10 : f32 to vector<32x1xf32>
    %26 = arith.divf %24, %25 : vector<32x1xf32>
    %cst_11 = arith.constant 9.99999974E-6 : f32
    %27 = vector.broadcast %cst_11 : f32 to vector<32x1xf32>
    %28 = arith.addf %26, %27 : vector<32x1xf32>
    %29 = math.rsqrt %28 : vector<32x1xf32>
    %c0_12 = arith.constant 0 : index
    %c0_13 = arith.constant 0 : index
    %30 = vector.load %arg4[%c0_12, %c0_13] : memref<1x256xf32, #tpu.memory_space<vmem>>, vector<1x256xf32>
    %c0_14 = arith.constant 0 : index
    %c0_15 = arith.constant 0 : index
    %31 = vector.load %arg5[%c0_14, %c0_15] : memref<1x256xf32, #tpu.memory_space<vmem>>, vector<1x256xf32>
    %32 = vector.broadcast %29 : vector<32x1xf32> to vector<32x256xf32>
    %33 = vector.broadcast %30 : vector<1x256xf32> to vector<32x256xf32>
    %34 = arith.mulf %32, %33 : vector<32x256xf32>
    %35 = arith.mulf %21, %34 : vector<32x256xf32>
    %36 = vector.broadcast %31 : vector<1x256xf32> to vector<32x256xf32>
    %37 = arith.addf %35, %36 : vector<32x256xf32>
    %c0_16 = arith.constant 0 : index
    %c0_17 = arith.constant 0 : index
    %38 = vector.load %arg6[%c0_16, %c0_17] : memref<32x256xf32, #tpu.memory_space<vmem>>, vector<32x256xf32>
    tpu.vector_store %arg6[%c0_16, %c0_17], %37 {strides = array<i32>} : memref<32x256xf32, #tpu.memory_space<vmem>>, vector<32x256xf32>,
    return
  }
  func.func @transform_0(%arg0: i32) -> (i32, i32) {
    %c0_i32 = arith.constant 0 : i32
    %c0_i32_0 = arith.constant 0 : i32
    return %arg0, %c0_i32 : i32, i32
  }
  func.func @transform_1(%arg0: i32) -> (i32, i32) {
    %c0_i32 = arith.constant 0 : i32
    %c0_i32_0 = arith.constant 0 : i32
    %c0_i32_1 = arith.constant 0 : i32
    return %c0_i32, %c0_i32_0 : i32, i32
  }
  func.func @transform_2(%arg0: i32) -> (i32, i32) {
    %c0_i32 = arith.constant 0 : i32
    %c0_i32_0 = arith.constant 0 : i32
    %c0_i32_1 = arith.constant 0 : i32
    return %c0_i32, %c0_i32_0 : i32, i32
  }
  func.func @transform_3(%arg0: i32) -> (i32, i32) {
    %c0_i32 = arith.constant 0 : i32
    %c0_i32_0 = arith.constant 0 : i32
    %c0_i32_1 = arith.constant 0 : i32
    return %c0_i32, %c0_i32_0 : i32, i32
  }
  func.func @transform_4(%arg0: i32) -> (i32, i32) {
    %c0_i32 = arith.constant 0 : i32
    %c0_i32_0 = arith.constant 0 : i32
    %c0_i32_1 = arith.constant 0 : i32
    return %c0_i32, %c0_i32_0 : i32, i32
  }
  func.func @transform_5(%arg0: i32) -> (i32, i32) {
    %c0_i32 = arith.constant 0 : i32
    %c0_i32_0 = arith.constant 0 : i32
    return %arg0, %c0_i32 : i32, i32
  }
}

</mosaic_0001>

<llo_original>
// kernel: _fused_patch_embed_ln.1
$region0: #{_fused_patch_embed_ln.1}
  #allocation0 [shape = 'u32[]', space=smem, size = 0x4, offset = 0x4, fixed_abs, tag = 'smem constant byte address 0x4 - core index']
  #allocation1 [shape = 'u32[144,128]{1,0:T(1,128)}', space=vmem, size = 0x12000, scoped, tag = 'internal scratch']
  %s0 = inlined_call_operand.vmem [shape: f32[32,256], index: 0, kind: input, shape index: {}]
  %s1 = inlined_call_operand.vmem [shape: f32[256,256], index: 1, kind: input, shape index: {}]
  %s2 = inlined_call_operand.vmem [shape: f32[1,256], index: 2, kind: input, shape index: {}]
  %s3 = inlined_call_operand.vmem [shape: f32[1,256], index: 3, kind: input, shape index: {}]
  %s4 = inlined_call_operand.vmem [shape: f32[1,256], index: 4, kind: input, shape index: {}]
  %s5 = inlined_call_operand.hbm [shape: f32[32,256], index: 5, kind: output, shape index: {}]
  %s6 = sld [smem:[#allocation0]]
  $region30: #{_fused_patch_embed_ln.1} parent=0
    _
  %s8 = ssub.s32 1, %s6
  %s9 = scalar_select 0, %s8, %s6
  $region1: #{_fused_patch_embed_ln.1} parent=0
    #allocation2 [shape = 'u8[32768]{0}', space=vmem, size = 0x8000, scoped, tag = 'output window, operand 0, single buffered']
    #allocation3 [shape = 's32[1]{0}', space=sflag, size = 0x4, scoped, tag = 'scoped memory for _fused_patch_embed_ln.1']
    %10 = vsyncpa [#allocation3], 0
    // Predicated region
    $region2: #{_fused_patch_embed_ln.1} parent=1 // pred_check
      _
    $region3: #{_fused_patch_embed_ln.1} parent=1 // pred_check_branch
      %12 = sbr.rel (0) target = $region5
    $region4: #{_fused_patch_embed_ln.1} parent=1 // pred_region
      _
    $region5: #{_fused_patch_embed_ln.1} parent=1 // pred_fallthru
      _
    // Predicated region
    $region6: #{_fused_patch_embed_ln.1} parent=1 // pred_check
      _
    $region7: #{_fused_patch_embed_ln.1} parent=1 // pred_check_branch
      %14 = sbr.rel (0) target = $region9
    $region8: #{_fused_patch_embed_ln.1} parent=1 // pred_region
      _
    $region9: #{_fused_patch_embed_ln.1} parent=1 // pred_fallthru
      _
    // Predicated region
    $region10: #{_fused_patch_embed_ln.1} parent=1 // pred_check
      _
    $region11: #{_fused_patch_embed_ln.1} parent=1 // pred_check_branch
      %16 = sbr.rel (0) target = $region13
    $region12: #{_fused_patch_embed_ln.1} parent=1 // pred_region
      _
    $region13: #{_fused_patch_embed_ln.1} parent=1 // pred_fallthru
      _
    // Predicated region
    $region14: #{_fused_patch_embed_ln.1} parent=1 // pred_check
      _
    $region15: #{_fused_patch_embed_ln.1} parent=1 // pred_check_branch
      %18 = sbr.rel (0) target = $region17
    $region16: #{_fused_patch_embed_ln.1} parent=1 // pred_region
      _
    $region17: #{_fused_patch_embed_ln.1} parent=1 // pred_fallthru
      _
    // Predicated region
    $region18: #{_fused_patch_embed_ln.1} parent=1 // pred_check
      _
    $region19: #{_fused_patch_embed_ln.1} parent=1 // pred_check_branch
      %20 = sbr.rel (0) target = $region21
    $region20: #{_fused_patch_embed_ln.1} parent=1 // pred_region
      _
    $region21: #{_fused_patch_embed_ln.1} parent=1 // pred_fallthru
      _
    %v21 = vld [vmem:[%s0] sm:$0xff]
    %v22 = vld [vmem:[%s0 + $0x8] sm:$0xff]
    %v23 = vld [vmem:[%s0 + $0x10] sm:$0xff]
    %v24 = vld [vmem:[%s0 + $0x18] sm:$0xff]
    %v25 = vld [vmem:[%s0 + $0x20] sm:$0xff]
    %v26 = vld [vmem:[%s0 + $0x28] sm:$0xff]
    %v27 = vld [vmem:[%s0 + $0x30] sm:$0xff]
    %v28 = vld [vmem:[%s0 + $0x38] sm:$0xff]
    %v29 = vlaneseq
    %v30 = vshrl.u32 %v29, 7
    %v31 = vadd.s32 %v30, 8
    %v32 = vadd.s32 %v30, 16
    %v33 = vadd.s32 %v30, 24
    %s34 = smul.u32 0, 32
    %v35 = vstv %s34
    %v36 = vadd.s32 %v30, %v35
    %v37 = vadd.s32 %v31, %v35
    %v38 = vadd.s32 %v32, %v35
    %v39 = vadd.s32 %v33, %v35
    %vm40 = vcmp.lt.s32.totalorder %v36, 32
    %vm41 = vcmp.lt.s32.totalorder %v37, 32
    %vm42 = vcmp.lt.s32.totalorder %v38, 32
    %vm43 = vcmp.lt.s32.totalorder %v39, 32
    %v44 = vsel %vm40, 1, 0
    %v45 = vsel %vm41, 1, 0
    %v46 = vsel %vm42, 1, 0
    %v47 = vsel %vm43, 1, 0
    %vm48 = vcmp.eq.s32.totalorder %v44, 1
    %vm49 = vcmp.eq.s32.totalorder %v45, 1
    %vm50 = vcmp.eq.s32.totalorder %v46, 1
    %vm51 = vcmp.eq.s32.totalorder %v47, 1
    %v52 = vsel %vm48, %v21, 0.0
    %v53 = vsel %vm48, %v22, 0.0
    %v54 = vsel %vm49, %v23, 0.0
    %v55 = vsel %vm49, %v24, 0.0
    %v56 = vsel %vm50, %v25, 0.0
    %v57 = vsel %vm50, %v26, 0.0
    %v58 = vsel %vm51, %v27, 0.0
    %v59 = vsel %vm51, %v28, 0.0
    %v60 = vld [vmem:[%s1] sm:$0xff]
    %v61 = vld [vmem:[%s1 + $0x8] sm:$0xff]
    %v62 = vld [vmem:[%s1 + $0x10] sm:$0xff]
    %v63 = vld [vmem:[%s1 + $0x18] sm:$0xff]
    %v64 = vld [vmem:[%s1 + $0x20] sm:$0xff]
    %v65 = vld [vmem:[%s1 + $0x28] sm:$0xff]
    %v66 = vld [vmem:[%s1 + $0x30] sm:$0xff]
    %v67 = vld [vmem:[%s1 + $0x38] sm:$0xff]
    %v68 = vld [vmem:[%s1 + $0x40] sm:$0xff]
    %v69 = vld [vmem:[%s1 + $0x48] sm:$0xff]
    %v70 = vld [vmem:[%s1 + $0x50] sm:$0xff]
    %v71 = vld [vmem:[%s1 + $0x58] sm:$0xff]
    %v72 = vld [vmem:[%s1 + $0x60] sm:$0xff]
    %v73 = vld [vmem:[%s1 + $0x68] sm:$0xff]
    %v74 = vld [vmem:[%s1 + $0x70] sm:$0xff]
    %v75 = vld [vmem:[%s1 + $0x78] sm:$0xff]
    %v76 = vld [vmem:[%s1 + $0x80] sm:$0xff]
    %v77 = vld [vmem:[%s1 + $0x88] sm:$0xff]
    %v78 = vld [vmem:[%s1 + $0x90] sm:$0xff]
    %v79 = vld [vmem:[%s1 + $0x98] sm:$0xff]
    %v80 = vld [vmem:[%s1 + $0xa0] sm:$0xff]
    %v81 = vld [vmem:[%s1 + $0xa8] sm:$0xff]
    %v82 = vld [vmem:[%s1 + $0xb0] sm:$0xff]
    %v83 = vld [vmem:[%s1 + $0xb8] sm:$0xff]
    %v84 = vld [vmem:[%s1 + $0xc0] sm:$0xff]
    %v85 = vld [vmem:[%s1 + $0xc8] sm:$0xff]
    %v86 = vld [vmem:[%s1 + $0xd0] sm:$0xff]
    %v87 = vld [vmem:[%s1 + $0xd8] sm:$0xff]
    %v88 = vld [vmem:[%s1 + $0xe0] sm:$0xff]
    %v89 = vld [vmem:[%s1 + $0xe8] sm:$0xff]
    %v90 = vld [vmem:[%s1 + $0xf0] sm:$0xff]
    %v91 = vld [vmem:[%s1 + $0xf8] sm:$0xff]
    %v92 = vld [vmem:[%s1 + $0x100] sm:$0xff]
    %v93 = vld [vmem:[%s1 + $0x108] sm:$0xff]
    %v94 = vld [vmem:[%s1 + $0x110] sm:$0xff]
    %v95 = vld [vmem:[%s1 + $0x118] sm:$0xff]
    %v96 = vld [vmem:[%s1 + $0x120] sm:$0xff]
    %v97 = vld [vmem:[%s1 + $0x128] sm:$0xff]
    %v98 = vld [vmem:[%s1 + $0x130] sm:$0xff]
    %v99 = vld [vmem:[%s1 + $0x138] sm:$0xff]
    %v100 = vld [vmem:[%s1 + $0x140] sm:$0xff]
    %v101 = vld [vmem:[%s1 + $0x148] sm:$0xff]
    %v102 = vld [vmem:[%s1 + $0x150] sm:$0xff]
    %v103 = vld [vmem:[%s1 + $0x158] sm:$0xff]
    %v104 = vld [vmem:[%s1 + $0x160] sm:$0xff]
    %v105 = vld [vmem:[%s1 + $0x168] sm:$0xff]
    %v106 = vld [vmem:[%s1 + $0x170] sm:$0xff]
    %v107 = vld [vmem:[%s1 + $0x178] sm:$0xff]
    %v108 = vld [vmem:[%s1 + $0x180] sm:$0xff]
    %v109 = vld [vmem:[%s1 + $0x188] sm:$0xff]
    %v110 = vld [vmem:[%s1 + $0x190] sm:$0xff]
    %v111 = vld [vmem:[%s1 + $0x198] sm:$0xff]
    %v112 = vld [vmem:[%s1 + $0x1a0] sm:$0xff]
    %v113 = vld [vmem:[%s1 + $0x1a8] sm:$0xff]
    %v114 = vld [vmem:[%s1 + $0x1b0] sm:$0xff]
    %v115 = vld [vmem:[%s1 + $0x1b8] sm:$0xff]
    %v116 = vld [vmem:[%s1 + $0x1c0] sm:$0xff]
    %v117 = vld [vmem:[%s1 + $0x1c8] sm:$0xff]
    %v118 = vld [vmem:[%s1 + $0x1d0] sm:$0xff]
    %v119 = vld [vmem:[%s1 + $0x1d8] sm:$0xff]
    %v120 = vld [vmem:[%s1 + $0x1e0] sm:$0xff]
    %v121 = vld [vmem:[%s1 + $0x1e8] sm:$0xff]
    %v122 = vld [vmem:[%s1 + $0x1f0] sm:$0xff]
    %v123 = vld [vmem:[%s1 + $0x1f8] sm:$0xff]
    %v124 = vld [vmem:[%s2] sm:$0x3]
    %v126 = vlaneseq
    %v127 = vshrl.u32 %v126, 7
    %v128 = vsub.s32 0, %v127
    %v129 = vrot.slane %v124, %v128
    %v130 = vlaneseq
    %v131 = vshrl.u32 %v130, 7
    %v132 = vsub.s32 1, %v131
    %v133 = vrot.slane %v124, %v132
    %136 = vmatprep.subr.mxu0 %v91
    %137 = vmatpush1.msra.mxu0 %v90
    %138 = vmatprep.subr.mxu0 %v89
    %139 = vmatpush1.msra.mxu0 %v88
    %140 = vmatprep.subr.mxu0 %v87
    %141 = vmatpush1.msra.mxu0 %v86
    %142 = vmatprep.subr.mxu0 %v85
    %143 = vmatpush1.msra.mxu0 %v84
    %144 = vmatprep.subr.mxu0 %v83
    %145 = vmatpush1.msra.mxu0 %v82
    %146 = vmatprep.subr.mxu0 %v81
    %147 = vmatpush1.msra.mxu0 %v80
    %148 = vmatprep.subr.mxu0 %v79
    %149 = vmatpush1.msra.mxu0 %v78
    %150 = vmatprep.subr.mxu0 %v77
    %151 = vmatpush1.msra.mxu0 %v76
    %152 = vmatprep.subr.mxu0 %v75
    %153 = vmatpush1.msra.mxu0 %v74
    %154 = vmatprep.subr.mxu0 %v73
    %155 = vmatpush1.msra.mxu0 %v72
    %156 = vmatprep.subr.mxu0 %v71
    %157 = vmatpush1.msra.mxu0 %v70
    %158 = vmatprep.subr.mxu0 %v69
    %159 = vmatpush1.msra.mxu0 %v68
    %160 = vmatprep.subr.mxu0 %v67
    %161 = vmatpush1.msra.mxu0 %v66
    %162 = vmatprep.subr.mxu0 %v65
    %163 = vmatpush1.msra.mxu0 %v64
    %164 = vmatprep.subr.mxu0 %v63
    %165 = vmatpush1.msra.mxu0 %v62
    %166 = vmatprep.subr.mxu0 %v61
    %167 = vmatpush1.msra.mxu0 %v60
    %168 = vmatprep.subr.mxu0 %v123
    %169 = vmatpush2.msra.mxu0 %v122
    %170 = vmatprep.subr.mxu0 %v121
    %171 = vmatpush2.msra.mxu0 %v120
    %172 = vmatprep.subr.mxu0 %v119
    %173 = vmatpush2.msra.mxu0 %v118
    %174 = vmatprep.subr.mxu0 %v117
    %175 = vmatpush2.msra.mxu0 %v116
    %176 = vmatprep.subr.mxu0 %v115
    %177 = vmatpush2.msra.mxu0 %v114
    %178 = vmatprep.subr.mxu0 %v113
    %179 = vmatpush2.msra.mxu0 %v112
    %180 = vmatprep.subr.mxu0 %v111
    %181 = vmatpush2.msra.mxu0 %v110
    %182 = vmatprep.subr.mxu0 %v109
    %183 = vmatpush2.msra.mxu0 %v108
    %184 = vmatprep.subr.mxu0 %v107
    %185 = vmatpush2.msra.mxu0 %v106
    %186 = vmatprep.subr.mxu0 %v105
    %187 = vmatpush2.msra.mxu0 %v104
    %188 = vmatprep.subr.mxu0 %v103
    %189 = vmatpush2.msra.mxu0 %v102
    %190 = vmatprep.subr.mxu0 %v101
    %191 = vmatpush2.msra.mxu0 %v100
    %192 = vmatprep.subr.mxu0 %v99
    %193 = vmatpush2.msra.mxu0 %v98
    %194 = vmatprep.subr.mxu0 %v97
    %195 = vmatpush2.msra.mxu0 %v96
    %196 = vmatprep.subr.mxu0 %v95
    %197 = vmatpush2.msra.mxu0 %v94
    %198 = vmatprep.subr.mxu0 %v93
    %199 = vmatpush2.msra.mxu0 %v92
    %200 = vmatprep.mubr.f32.mxu0 %v53
    %201 = vmatmul.mubr.f32.gmra.mxu0 %v52
    %v202 = vpop.f32.mrf.mxu0
    %v203 = vadd.f32 %v129, %v202
    %v204 = vpop.f32.mrf.mxu0
    %v205 = vadd.f32 %v133, %v204
    %206 = vmatprep.mubr.f32.mxu0 %v55
    %207 = vmatmul.mubr.f32.gmra.mxu0 %v54
    %v208 = vpop.f32.mrf.mxu0
    %v209 = vadd.f32 %v129, %v208
    %v210 = vpop.f32.mrf.mxu0
    %v211 = vadd.f32 %v133, %v210
    %212 = vmatprep.mubr.f32.mxu0 %v57
    %213 = vmatmul.mubr.f32.gmra.mxu0 %v56
    %v214 = vpop.f32.mrf.mxu0
    %v215 = vadd.f32 %v129, %v214
    %v216 = vpop.f32.mrf.mxu0
    %v217 = vadd.f32 %v133, %v216
    %218 = vmatprep.mubr.f32.mxu0 %v59
    %219 = vmatmul.mubr.f32.gmra.mxu0 %v58
    %v220 = vpop.f32.mrf.mxu0
    %v221 = vadd.f32 %v129, %v220
    %v222 = vpop.f32.mrf.mxu0
    %v223 = vadd.f32 %v133, %v222
    %224 = vdwg.mxu0
    %v225 = vadd.f32 %v203, %v205
    %226 = vadd.xlane.f32.xlu0 %v225
    %v227 = vpop.xlane.xlu0 %226
    %v228 = vadd.f32 %v209, %v211
    %229 = vadd.xlane.f32.xlu0 %v228
    %v230 = vpop.xlane.xlu0 %229
    %v231 = vadd.f32 %v215, %v217
    %232 = vadd.xlane.f32.xlu0 %v231
    %v233 = vpop.xlane.xlu0 %232
    %v234 = vadd.f32 %v221, %v223
    %235 = vadd.xlane.f32.xlu0 %v234
    %v236 = vpop.xlane.xlu0 %235
    %v237 = vrcp.pop 256.0
    %v238 = vmul.f32 %v227, %v237
    %v239 = vmul.f32 %v230, %v237
    %v240 = vmul.f32 %v233, %v237
    %v241 = vmul.f32 %v236, %v237
    %v242 = vsub.f32 %v203, %v238
    %v243 = vsub.f32 %v205, %v238
    %v244 = vsub.f32 %v209, %v239
    %v245 = vsub.f32 %v211, %v239
    %v246 = vsub.f32 %v215, %v240
    %v247 = vsub.f32 %v217, %v240
    %v248 = vsub.f32 %v221, %v241
    %v249 = vsub.f32 %v223, %v241
    %v250 = vmul.f32 %v242, %v242
    %v251 = vmul.f32 %v243, %v243
    %v252 = vmul.f32 %v244, %v244
    %v253 = vmul.f32 %v245, %v245
    %v254 = vmul.f32 %v246, %v246
    %v255 = vmul.f32 %v247, %v247
    %v256 = vmul.f32 %v248, %v248
    %v257 = vmul.f32 %v249, %v249
    %v258 = vadd.f32 %v250, %v251
    %259 = vadd.xlane.f32.xlu0 %v258
    %v260 = vpop.xlane.xlu0 %259
    %v261 = vadd.f32 %v252, %v253
    %262 = vadd.xlane.f32.xlu0 %v261
    %v263 = vpop.xlane.xlu0 %262
    %v264 = vadd.f32 %v254, %v255
    %265 = vadd.xlane.f32.xlu0 %v264
    %v266 = vpop.xlane.xlu0 %265
    %v267 = vadd.f32 %v256, %v257
    %268 = vadd.xlane.f32.xlu0 %v267
    %v269 = vpop.xlane.xlu0 %268
    %v270 = vmul.f32 %v260, %v237
    %v271 = vmul.f32 %v263, %v237
    %v272 = vmul.f32 %v266, %v237
    %v273 = vmul.f32 %v269, %v237
    %v274 = vadd.f32 %v270, 1e-05
    %v275 = vadd.f32 %v271, 1e-05
    %v276 = vadd.f32 %v272, 1e-05
    %v277 = vadd.f32 %v273, 1e-05
    %v278 = vrsqrt.pop %v274
    %v279 = vrsqrt.pop %v275
    %v280 = vrsqrt.pop %v276
    %v281 = vrsqrt.pop %v277
    %v282 = vld [vmem:[%s3] sm:$0x3]
    %v283 = vld [vmem:[%s4] sm:$0x3]
    %v285 = vlaneseq
    %v286 = vshrl.u32 %v285, 7
    %v287 = vsub.s32 0, %v286
    %v288 = vrot.slane %v282, %v287
    %v289 = vlaneseq
    %v290 = vshrl.u32 %v289, 7
    %v291 = vsub.s32 1, %v290
    %v292 = vrot.slane %v282, %v291
    %v295 = vmul.f32 %v278, %v288
    %v296 = vmul.f32 %v278, %v292
    %v297 = vmul.f32 %v279, %v288
    %v298 = vmul.f32 %v279, %v292
    %v299 = vmul.f32 %v280, %v288
    %v300 = vmul.f32 %v280, %v292
    %v301 = vmul.f32 %v281, %v288
    %v302 = vmul.f32 %v281, %v292
    %v303 = vmul.f32 %v242, %v295
    %v304 = vmul.f32 %v243, %v296
    %v305 = vmul.f32 %v244, %v297
    %v306 = vmul.f32 %v245, %v298
    %v307 = vmul.f32 %v246, %v299
    %v308 = vmul.f32 %v247, %v300
    %v309 = vmul.f32 %v248, %v301
    %v310 = vmul.f32 %v249, %v302
    %v312 = vlaneseq
    %v313 = vshrl.u32 %v312, 7
    %v314 = vsub.s32 0, %v313
    %v315 = vrot.slane %v283, %v314
    %v316 = vlaneseq
    %v317 = vshrl.u32 %v316, 7
    %v318 = vsub.s32 1, %v317
    %v319 = vrot.slane %v283, %v318
    %v322 = vadd.f32 %v303, %v315
    %v323 = vadd.f32 %v304, %v319
    %v324 = vadd.f32 %v305, %v315
    %v325 = vadd.f32 %v306, %v319
    %v326 = vadd.f32 %v307, %v315
    %v327 = vadd.f32 %v308, %v319
    %v328 = vadd.f32 %v309, %v315
    %v329 = vadd.f32 %v310, %v319
    %330 = vst [vmem:[#allocation2] sm:$0xff] %v322
    %331 = vst [vmem:[#allocation2 + $0x8] sm:$0xff] %v323
    %332 = vst [vmem:[#allocation2 + $0x10] sm:$0xff] %v324
    %333 = vst [vmem:[#allocation2 + $0x18] sm:$0xff] %v325
    %334 = vst [vmem:[#allocation2 + $0x20] sm:$0xff] %v326
    %335 = vst [vmem:[#allocation2 + $0x28] sm:$0xff] %v327
    %336 = vst [vmem:[#allocation2 + $0x30] sm:$0xff] %v328
    %337 = vst [vmem:[#allocation2 + $0x38] sm:$0xff] %v329
    // Predicated region
    $region22: #{_fused_patch_embed_ln.1} parent=1 // pred_check
      _
    $region23: #{_fused_patch_embed_ln.1} parent=1 // pred_check_branch
      %339 = sbr.rel (0) target = $region25
    $region24: #{_fused_patch_embed_ln.1} parent=1 // pred_region
      %s341 = ssub.s32 1024, 1024
      %342 = vsyncadd [#allocation3], %s341
      %s343 = sshll.u32 [#allocation2], 4
      %s344 = int_to_ptr.vmem [resolvable:$true] %s343
      %349 = dma.vmem_to_hbm [thread:$0]  %s344, 1024, %s5, [#allocation3], 256, 256, 16
    $region25: #{_fused_patch_embed_ln.1} parent=1 // pred_fallthru
      _
    // Predicated region
    $region26: #{_fused_patch_embed_ln.1} parent=1 // pred_check
      _
    $region27: #{_fused_patch_embed_ln.1} parent=1 // pred_check_branch
      %351 = sbr.rel (0) target = $region29
    $region28: #{_fused_patch_embed_ln.1} parent=1 // pred_region
      %352 = dma.done [#allocation3], 1024
    $region29: #{_fused_patch_embed_ln.1} parent=1 // pred_fallthru
      _
    %353 = vsyncpa [#allocation3], 1

</llo_original>
